<compile_context>
chip_gen: v6e
topology: v6e:2x2x1
jax: 0.10.0
libtpu: 0.0.40
codegen_flags: <defaults>
</compile_context>

<pallas_src>
import functools

import jax
import jax.numpy as jnp
from jax import lax
from jax.experimental import pallas as pl
from jax.experimental.pallas import tpu as pltpu

# SELU constants (identical to torch.nn.SELU)
_SELU_ALPHA = 1.6732632423543772848170429916717
_SELU_SCALE = 1.0507009873554804934193349852946


def _conv_selu_kernel(x_ref, w_ref, b_ref, o_ref, lhs_ref, *,
                      ksize, stride, dilation, pad,
                      h_in, w_in, c_in, h_out, batch_block):
    """One grid step = `batch_block` images = one MXU matmul.

    x_ref  : (batch_block*H, W*Cin)        lane-dense fused NHWC input
                                           (rows pre-split by phase if stride>1)
    w_ref  : (ksize*W*Cin, Wout*Cout)      banded im2col weight (unpadded cols)
    b_ref  : (1, Wout*Cout)                bias tiled across output width
    o_ref  : (batch_block*Hout, Wout*Cout) lane-dense fused output
    lhs_ref: (batch_block*Hout, ksize*W*Cin) VMEM scratch, MXU operand dtype
    """
    wc = w_in * c_in
    h_phase = h_in // stride          # rows per stride-phase plane (=h_in if s=1)

    # Assemble the LHS.  For vertical tap i, output row ho reads input row
    # r = ho*stride + i*dilation - pad; rows falling in the vertical zero
    # padding are zero-filled (only the few border rows).  All bounds are
    # static Python ints, so every access is a contiguous static slice.
    for b in range(batch_block):
        m0 = b * h_out                # first LHS/output row of this image
        r0 = b * h_in                 # first input row of this image
        for i in range(ksize):
            off = i * dilation - pad
            lo = 0 if off >= 0 else (-off + stride - 1) // stride
            hi = min(h_out, (h_in - 1 - off) // stride + 1)
            phase = off % stride                 # 0 when stride == 1
            base = (off - phase) // stride
            k0 = i * wc
            if hi > lo:
                src0 = r0 + phase * h_phase + lo + base
                lhs_ref[m0 + lo:m0 + hi, k0:k0 + wc] = \
                    x_ref[src0:src0 + (hi - lo), :]
            if lo > 0:                            # top vertical-padding rows
                lhs_ref[m0:m0 + lo, k0:k0 + wc] = \
                    jnp.zeros((lo, wc), lhs_ref.dtype)
            if hi < h_out:                        # bottom vertical-padding rows
                lhs_ref[m0 + hi:m0 + h_out, k0:k0 + wc] = \
                    jnp.zeros((h_out - hi, wc), lhs_ref.dtype)

    # One batch-stacked MXU matmul, f32 accumulation.
    acc = jnp.dot(lhs_ref[...], w_ref[...], preferred_element_type=jnp.float32)
    acc = acc + b_ref[...]                        # (1, N) bias broadcast

    # SELU.  exp(min(x, 0)) keeps the discarded branch finite; jnp.exp (not
    # expm1) is the Mosaic-guaranteed EUP path (~1e-7 abs error vs expm1).
    neg = _SELU_ALPHA * (jnp.exp(jnp.minimum(acc, 0.0)) - 1.0)
    out = _SELU_SCALE * jnp.where(acc > 0.0, acc, neg)
    o_ref[...] = out.astype(o_ref.dtype)          # unmasked lane-dense store


def _build_banded_weight(weight_oihw, *, w_in, pad, stride, dilation, w_out):
    """Banded im2col weight, shape (kh*W*Cin, Wout*Cout), UNPADDED columns.

    row = i*(W*Cin) + wc*Cin + c   (vertical tap i, input column wc, channel c)
    col = w*Cout + o
    Nonzero iff wc == w*stride + j*dilation - pad for some horizontal tap j,
    value W[o, c, i, j].  Taps falling in the horizontal zero-padding simply
    have no row, so the activation data never needs horizontal padding.
    """
    c_out, c_in, kh, kw = weight_oihw.shape
    k_len = w_in * c_in
    w_k = jnp.transpose(weight_oihw, (2, 3, 1, 0))        # (kh, kw, Cin, Cout)
    p = jnp.arange(k_len)
    col = p // c_in                                       # input column index
    ch = p % c_in
    wo = jnp.arange(w_out)
    jd = col[:, None] - wo[None, :] * stride + pad        # candidate j*dilation
    valid = (jd >= 0) & (jd < kw * dilation) & (jd % dilation == 0)
    j_idx = jnp.where(valid, jd // dilation, 0)
    gathered = w_k[:, j_idx, ch[:, None], :]              # (kh, k_len, Wout, Cout)
    wbig = jnp.where(valid[None, :, :, None], gathered, 0.0)
    return wbig.reshape(kh * k_len, w_out * c_out)


def conv_selu_nhwc(x_nhwc, weight, bias, *, stride=1, pad=1, dilation=1,
                   use_bf16=False, batch_block=None):
    """ConvSELU forward, NHWC in / NHWC out (no boundary transposes).

    x_nhwc : (N, H, W, Cin) float32
    weight : (Cout, Cin, kh, kw)   PyTorch OIHW layout
    bias   : (Cout,)
    """
    n, h, w, c_in = x_nhwc.shape
    c_out, c_in_w, kh, kw = weight.shape
    assert c_in_w == c_in and kh == kw, "square kernels, matching Cin"
    ksize = kh
    h_out = (h + 2 * pad - dilation * (ksize - 1) - 1) // stride + 1
    w_out = (w + 2 * pad - dilation * (ksize - 1) - 1) // stride + 1
    if stride > 1:
        # TODO(synk): pad rows when H % stride != 0.
        assert h % stride == 0, "row phase-split requires H % stride == 0"

    if batch_block is None:
        # Stack enough images into the matmul M dimension to fill the MXU rows
        # (128 on v5e, 256 on v6e/v7x; 128 is the common floor).  On v7x with
        # large batches cap batch_block so n//batch_block >= 2 and both
        # TensorCores receive grid steps under the "parallel" batch axis.
        target = max(1, 128 // max(1, h_out))
        batch_block = max(bb for bb in range(1, min(n, target) + 1)
                          if n % bb == 0)
    assert n % batch_block == 0

    # bf16 only on the MXU operands (all generations benefit; v5e MXU is
    # bf16-native).  Accumulation and SELU stay f32.
    mxu_dtype = jnp.bfloat16 if use_bf16 else jnp.float32

    # Lane-dense fused 2-D views (free reshapes).  For stride>1 the wrapper
    # pre-splits rows by stride-phase once (single XLA transpose) so every
    # in-kernel per-tap read is a contiguous slice, never sublane-strided.
    x_fused = x_nhwc.reshape(n, h, w * c_in)
    if stride > 1:
        x_fused = x_fused.reshape(n, h // stride, stride, w * c_in)
        x_fused = jnp.transpose(x_fused, (0, 2, 1, 3))
    x_fused = x_fused.reshape(n * h, w * c_in).astype(mxu_dtype)

    wbig = _build_banded_weight(
        weight.astype(jnp.float32), w_in=w, pad=pad, stride=stride,
        dilation=dilation, w_out=w_out).astype(mxu_dtype)
    b_tiled = jnp.tile(bias.astype(jnp.float32), w_out).reshape(1, w_out * c_out)

    kernel = functools.partial(
        _conv_selu_kernel, ksize=ksize, stride=stride, dilation=dilation,
        pad=pad, h_in=h, w_in=w, c_in=c_in, h_out=h_out,
        batch_block=batch_block)

    # Weight/bias index_maps are constant (0,0), so Pallas fetches them once;
    # at ~100 KB the extra double-buffer copy is negligible (single-buffer them
    # once the W-blocked production RHS exists).
    out_fused = pl.pallas_call(
        kernel,
        out_shape=jax.ShapeDtypeStruct((n * h_out, w_out * c_out), jnp.float32),
        grid_spec=pltpu.PrefetchScalarGridSpec(
            num_scalar_prefetch=0,
            grid=(n // batch_block,),
            in_specs=[
                pl.BlockSpec((batch_block * h, w * c_in), lambda g: (g, 0)),
                pl.BlockSpec((ksize * w * c_in, w_out * c_out),
                             lambda g: (0, 0)),
                pl.BlockSpec((1, w_out * c_out), lambda g: (0, 0)),
            ],
            out_specs=pl.BlockSpec((batch_block * h_out, w_out * c_out),
                                   lambda g: (g, 0)),
            scratch_shapes=[
                pltpu.VMEM((batch_block * h_out, ksize * w * c_in), mxu_dtype)],
        ),
        # Batch axis "parallel": with >1 grid step, v7x maps steps to both TCs.
        compiler_params=pltpu.CompilerParams(
            dimension_semantics=("parallel",)),
    )(x_fused, wbig, b_tiled)

    return out_fused.reshape(n, h_out, w_out, c_out)


def conv_selu(x_nchw, weight, bias, *, stride=1, pad=1, dilation=1,
              use_bf16=False, batch_block=None):
    """NCHW-compatibility wrapper (PyTorch layout).  NHWC callers should use
    conv_selu_nhwc directly and skip both boundary transposes."""
    x_nhwc = jnp.transpose(x_nchw, (0, 2, 3, 1))
    out_nhwc = conv_selu_nhwc(x_nhwc, weight, bias, stride=stride, pad=pad,
                              dilation=dilation, use_bf16=use_bf16,
                              batch_block=batch_block)
    return jnp.transpose(out_nhwc, (0, 3, 1, 2))


def _reference(x_nchw, weight, bias, *, stride, pad, dilation):
    """Pure-JAX reference (lax conv + SELU with expm1)."""
    out = lax.conv_general_dilated(
        x_nchw.astype(jnp.float32), weight.astype(jnp.float32),
        window_strides=(stride, stride),
        padding=((pad, pad), (pad, pad)),
        rhs_dilation=(dilation, dilation),
        dimension_numbers=("NCHW", "OIHW", "NCHW"),
    ) + bias.reshape(1, -1, 1, 1)
    return _SELU_SCALE * jnp.where(
        out > 0.0, out, _SELU_ALPHA * jnp.expm1(out))


if __name__ == "__main__":
    N, C_IN, C_OUT, H, W = 2, 4, 8, 16, 16
    key = jax.random.PRNGKey(0)
    keys = jax.random.split(key, 4)

    def make_case(k, c_in, c_out, ksz):
        kx, kw_, kb = jax.random.split(k, 3)
        x = jax.random.normal(kx, (N, c_in, H, W), dtype=jnp.float32)
        bound = 1.0 / ((c_in * ksz * ksz) ** 0.5)
        wgt = jax.random.uniform(kw_, (c_out, c_in, ksz, ksz),
                                 minval=-bound, maxval=bound, dtype=jnp.float32)
        b = jax.random.uniform(kb, (c_out,), minval=-bound, maxval=bound,
                               dtype=jnp.float32)
        return x, wgt, b

    def check(name, x, wgt, b, *, stride, pad, dilation, **kw):
        ref = _reference(x, wgt, b, stride=stride, pad=pad, dilation=dilation)
        out = jax.block_until_ready(
            conv_selu(x, wgt, b, stride=stride, pad=pad, dilation=dilation,
                      **kw))
        assert out.shape == ref.shape, (name, out.shape, ref.shape)
        tol = 5e-2 if kw.get("use_bf16") else 5e-5
        assert jnp.allclose(out, ref, atol=tol, rtol=tol), f"mismatch: {name}"

    # Local branch layer: ConvSELU(in, nf, 3, 1, 1, 1).
    x, wgt, b = make_case(keys[0], C_IN, C_OUT, 3)
    check("local f32 batch-stacked", x, wgt, b, stride=1, pad=1, dilation=1)
    check("local f32 per-image grid", x, wgt, b, stride=1, pad=1, dilation=1,
          batch_block=1)
    check("local bf16 operands", x, wgt, b, stride=1, pad=1, dilation=1,
          use_bf16=True)

    # Dilation branch layer: ConvSELU(nf, nf, 3, 1, 2, 2).
    x, wgt, b = make_case(keys[1], C_IN, C_OUT, 3)
    check("dilated f32", x, wgt, b, stride=1, pad=2, dilation=2)

    # Global branch layer: ConvSELU(in, nf, 3, 2, 1, 1)  (stride-2 phase split).
    x, wgt, b = make_case(keys[2], C_IN, C_OUT, 3)
    check("strided f32", x, wgt, b, stride=2, pad=1, dilation=1)

    # Fusion head layer: ConvSELU(4*nf, nf, 1, 1, 0, 1)  (1x1 conv).
    x, wgt, b = make_case(keys[3], C_IN, C_OUT, 1)
    check("1x1 f32", x, wgt, b, stride=1, pad=0, dilation=1)

    print("KERNEL_OK")
</pallas_src>

<mosaic_0001>
module attributes {stable_mosaic.version = 11 : i64} {
  func.func @_conv_selu_kernel(%arg0: i32, %arg1: memref<32x64xf32, #tpu.memory_space<vmem>>, %arg2: memref<192x128xf32, #tpu.memory_space<vmem>>, %arg3: memref<1x128xf32, #tpu.memory_space<vmem>>, %arg4: memref<32x128xf32, #tpu.memory_space<vmem>>, %arg5: memref<32x192xf32, #tpu.memory_space<vmem>>) attributes {dimension_semantics = [#tpu.dimension_semantics<parallel>], iteration_bounds = array<i64: 1>, scalar_prefetch = 0 : i64, scratch_operands = 1 : i64, tpu.core_type = #tpu.core_type<tc>, window_params = [{transform_indices = @transform_0, window_bounds = array<i64: 32, 64>}, {pipeline_mode = #tpu.pipeline_mode<synchronous>, transform_indices = @transform_1, window_bounds = array<i64: 192, 128>}, {pipeline_mode = #tpu.pipeline_mode<synchronous>, transform_indices = @transform_2, window_bounds = array<i64: 1, 128>}, {transform_indices = @transform_3, window_bounds = array<i64: 32, 128>}]} {
    %c0 = arith.constant 0 : index
    %c0_0 = arith.constant 0 : index
    %0 = vector.load %arg1[%c0, %c0_0] : memref<32x64xf32, #tpu.memory_space<vmem>>, vector<15x64xf32>
    %c1 = arith.constant 1 : index
    %c0_1 = arith.constant 0 : index
    %1 = vector.load %arg5[%c1, %c0_1] : memref<32x192xf32, #tpu.memory_space<vmem>>, vector<15x64xf32>
    tpu.vector_store %arg5[%c1, %c0_1], %0 {strides = array<i32>} : memref<32x192xf32, #tpu.memory_space<vmem>>, vector<15x64xf32>,
    %cst = arith.constant 0.000000e+00 : f32
    %2 = vector.broadcast %cst : f32 to vector<1x64xf32>
    %c0_2 = arith.constant 0 : index
    %c0_3 = arith.constant 0 : index
    %3 = vector.load %arg5[%c0_2, %c0_3] : memref<32x192xf32, #tpu.memory_space<vmem>>, vector<1x64xf32>
    tpu.vector_store %arg5[%c0_2, %c0_3], %2 {strides = array<i32>} : memref<32x192xf32, #tpu.memory_space<vmem>>, vector<1x64xf32>,
    %c0_4 = arith.constant 0 : index
    %c0_5 = arith.constant 0 : index
    %4 = vector.load %arg1[%c0_4, %c0_5] : memref<32x64xf32, #tpu.memory_space<vmem>>, vector<16x64xf32>
    %c0_6 = arith.constant 0 : index
    %c64 = arith.constant 64 : index
    %5 = vector.load %arg5[%c0_6, %c64] : memref<32x192xf32, #tpu.memory_space<vmem>>, vector<16x64xf32>
    tpu.vector_store %arg5[%c0_6, %c64], %4 {strides = array<i32>} : memref<32x192xf32, #tpu.memory_space<vmem>>, vector<16x64xf32>,
    %c1_7 = arith.constant 1 : index
    %c0_8 = arith.constant 0 : index
    %6 = vector.load %arg1[%c1_7, %c0_8] : memref<32x64xf32, #tpu.memory_space<vmem>>, vector<15x64xf32>
    %c0_9 = arith.constant 0 : index
    %c128 = arith.constant 128 : index
    %7 = vector.load %arg5[%c0_9, %c128] : memref<32x192xf32, #tpu.memory_space<vmem>>, vector<15x64xf32>
    tpu.vector_store %arg5[%c0_9, %c128], %6 {strides = array<i32>} : memref<32x192xf32, #tpu.memory_space<vmem>>, vector<15x64xf32>,
    %cst_10 = arith.constant 0.000000e+00 : f32
    %8 = vector.broadcast %cst_10 : f32 to vector<1x64xf32>
    %c15 = arith.constant 15 : index
    %c128_11 = arith.constant 128 : index
    %9 = vector.load %arg5[%c15, %c128_11] : memref<32x192xf32, #tpu.memory_space<vmem>>, vector<1x64xf32>
    tpu.vector_store %arg5[%c15, %c128_11], %8 {strides = array<i32>} : memref<32x192xf32, #tpu.memory_space<vmem>>, vector<1x64xf32>,
    %c16 = arith.constant 16 : index
    %c0_12 = arith.constant 0 : index
    %10 = vector.load %arg1[%c16, %c0_12] : memref<32x64xf32, #tpu.memory_space<vmem>>, vector<15x64xf32>
    %c17 = arith.constant 17 : index
    %c0_13 = arith.constant 0 : index
    %11 = vector.load %arg5[%c17, %c0_13] : memref<32x192xf32, #tpu.memory_space<vmem>>, vector<15x64xf32>
    tpu.vector_store %arg5[%c17, %c0_13], %10 {strides = array<i32>} : memref<32x192xf32, #tpu.memory_space<vmem>>, vector<15x64xf32>,
    %cst_14 = arith.constant 0.000000e+00 : f32
    %12 = vector.broadcast %cst_14 : f32 to vector<1x64xf32>
    %c16_15 = arith.constant 16 : index
    %c0_16 = arith.constant 0 : index
    %13 = vector.load %arg5[%c16_15, %c0_16] : memref<32x192xf32, #tpu.memory_space<vmem>>, vector<1x64xf32>
    tpu.vector_store %arg5[%c16_15, %c0_16], %12 {strides = array<i32>} : memref<32x192xf32, #tpu.memory_space<vmem>>, vector<1x64xf32>,
    %c16_17 = arith.constant 16 : index
    %c0_18 = arith.constant 0 : index
    %14 = vector.load %arg1[%c16_17, %c0_18] : memref<32x64xf32, #tpu.memory_space<vmem>>, vector<16x64xf32>
    %c16_19 = arith.constant 16 : index
    %c64_20 = arith.constant 64 : index
    %15 = vector.load %arg5[%c16_19, %c64_20] : memref<32x192xf32, #tpu.memory_space<vmem>>, vector<16x64xf32>
    tpu.vector_store %arg5[%c16_19, %c64_20], %14 {strides = array<i32>} : memref<32x192xf32, #tpu.memory_space<vmem>>, vector<16x64xf32>,
    %c17_21 = arith.constant 17 : index
    %c0_22 = arith.constant 0 : index
    %16 = vector.load %arg1[%c17_21, %c0_22] : memref<32x64xf32, #tpu.memory_space<vmem>>, vector<15x64xf32>
    %c16_23 = arith.constant 16 : index
    %c128_24 = arith.constant 128 : index
    %17 = vector.load %arg5[%c16_23, %c128_24] : memref<32x192xf32, #tpu.memory_space<vmem>>, vector<15x64xf32>
    tpu.vector_store %arg5[%c16_23, %c128_24], %16 {strides = array<i32>} : memref<32x192xf32, #tpu.memory_space<vmem>>, vector<15x64xf32>,
    %cst_25 = arith.constant 0.000000e+00 : f32
    %18 = vector.broadcast %cst_25 : f32 to vector<1x64xf32>
    %c31 = arith.constant 31 : index
    %c128_26 = arith.constant 128 : index
    %19 = vector.load %arg5[%c31, %c128_26] : memref<32x192xf32, #tpu.memory_space<vmem>>, vector<1x64xf32>
    tpu.vector_store %arg5[%c31, %c128_26], %18 {strides = array<i32>} : memref<32x192xf32, #tpu.memory_space<vmem>>, vector<1x64xf32>,
    %c0_27 = arith.constant 0 : index
    %c0_28 = arith.constant 0 : index
    %20 = vector.load %arg5[%c0_27, %c0_28] : memref<32x192xf32, #tpu.memory_space<vmem>>, vector<32x192xf32>
    %c0_29 = arith.constant 0 : index
    %c0_30 = arith.constant 0 : index
    %21 = vector.load %arg2[%c0_29, %c0_30] : memref<192x128xf32, #tpu.memory_space<vmem>>, vector<192x128xf32>
    %cst_31 = arith.constant dense<0.000000e+00> : vector<32x128xf32>
    %22 = tpu.matmul %20, %21, %cst_31 {dimension_numbers = #tpu.dot_dimension_numbers<[1], [0], [0], [1], [0, 0, 1, 1], [], []>} : vector<32x192xf32>, vector<192x128xf32>, vector<32x128xf32> -> vector<32x128xf32>
    %c0_32 = arith.constant 0 : index
    %c0_33 = arith.constant 0 : index
    %23 = vector.load %arg3[%c0_32, %c0_33] : memref<1x128xf32, #tpu.memory_space<vmem>>, vector<1x128xf32>
    %24 = vector.broadcast %23 : vector<1x128xf32> to vector<32x128xf32>
    %25 = arith.addf %22, %24 : vector<32x128xf32>
    %cst_34 = arith.constant 0.000000e+00 : f32
    %26 = vector.broadcast %cst_34 : f32 to vector<32x128xf32>
    %27 = arith.minimumf %25, %26 : vector<32x128xf32>
    %28 = math.exp %27 : vector<32x128xf32>
    %cst_35 = arith.constant 1.000000e+00 : f32
    %29 = vector.broadcast %cst_35 : f32 to vector<32x128xf32>
    %30 = arith.subf %28, %29 : vector<32x128xf32>
    %cst_36 = arith.constant 1.67326319 : f32
    %31 = vector.broadcast %cst_36 : f32 to vector<32x128xf32>
    %32 = arith.mulf %31, %30 : vector<32x128xf32>
    %cst_37 = arith.constant 0.000000e+00 : f32
    %33 = vector.broadcast %cst_37 : f32 to vector<32x128xf32>
    %34 = arith.cmpf ogt, %25, %33 : vector<32x128xf32>
    %35 = arith.select %34, %25, %32 : vector<32x128xi1>, vector<32x128xf32>
    %cst_38 = arith.constant 1.05070102 : f32
    %36 = vector.broadcast %cst_38 : f32 to vector<32x128xf32>
    %37 = arith.mulf %36, %35 : vector<32x128xf32>
    %c0_39 = arith.constant 0 : index
    %c0_40 = arith.constant 0 : index
    %38 = vector.load %arg4[%c0_39, %c0_40] : memref<32x128xf32, #tpu.memory_space<vmem>>, vector<32x128xf32>
    tpu.vector_store %arg4[%c0_39, %c0_40], %37 {strides = array<i32>} : memref<32x128xf32, #tpu.memory_space<vmem>>, vector<32x128xf32>,
    return
  }
  func.func @transform_0(%arg0: i32) -> (i32, i32) {
    %c0_i32 = arith.constant 0 : i32
    %c0_i32_0 = arith.constant 0 : i32
    return %arg0, %c0_i32 : i32, i32
  }
  func.func @transform_1(%arg0: i32) -> (i32, i32) {
    %c0_i32 = arith.constant 0 : i32
    %c0_i32_0 = arith.constant 0 : i32
    %c0_i32_1 = arith.constant 0 : i32
    return %c0_i32, %c0_i32_0 : i32, i32
  }
  func.func @transform_2(%arg0: i32) -> (i32, i32) {
    %c0_i32 = arith.constant 0 : i32
    %c0_i32_0 = arith.constant 0 : i32
    %c0_i32_1 = arith.constant 0 : i32
    return %c0_i32, %c0_i32_0 : i32, i32
  }
  func.func @transform_3(%arg0: i32) -> (i32, i32) {
    %c0_i32 = arith.constant 0 : i32
    %c0_i32_0 = arith.constant 0 : i32
    return %arg0, %c0_i32 : i32, i32
  }
}

</mosaic_0001>

<llo_original>
// kernel: tpu_custom_call.1
$region0: #{tpu_custom_call.1}
  #allocation0 [shape = 'u32[]', space=smem, size = 0x4, offset = 0x4, fixed_abs, tag = 'smem constant byte address 0x4 - core index']
  #allocation1 [shape = 'u32[144,128]{1,0:T(1,128)}', space=vmem, size = 0x12000, scoped, tag = 'internal scratch']
  #allocation2 [shape = 'f32[32,192]{1,0:T(8,128)}', space=vmem, size = 0x8000, scoped, tag = 'scratch operand']
  %s0 = inlined_call_operand.hbm [shape: f32[32,64], index: 0, kind: input, shape index: {}]
  %s1 = inlined_call_operand.hbm [shape: f32[192,128], index: 1, kind: input, shape index: {}]
  %s2 = inlined_call_operand.vmem [shape: f32[1,128], index: 2, kind: input, shape index: {}]
  %s3 = inlined_call_operand.hbm [shape: f32[32,128], index: 3, kind: output, shape index: {}]
  %s4 = sld [smem:[#allocation0]]
  $region30: #{tpu_custom_call.1} parent=0
    _
  %s6 = ssub.s32 1, %s4
  %s7 = scalar_select 0, %s6, %s4
  $region1: #{tpu_custom_call.1} parent=0
    #allocation3 [shape = 'u8[16384]{0}', space=vmem, size = 0x4000, scoped, tag = 'input window, operand 0, single buffered']
    #allocation4 [shape = 's32[1]{0}', space=sflag, size = 0x4, scoped, tag = 'scoped memory for tpu_custom_call.1']
    #allocation5 [shape = 's32[1]{0}', space=sflag, size = 0x4, scoped, tag = 'scoped memory for tpu_custom_call.1']
    #allocation6 [shape = 'u8[98304]{0}', space=vmem, size = 0x18000, scoped, tag = 'input window, operand 1, single buffered']
    #allocation7 [shape = 's32[1]{0}', space=sflag, size = 0x4, scoped, tag = 'scoped memory for tpu_custom_call.1']
    #allocation8 [shape = 'u8[16384]{0}', space=vmem, size = 0x4000, scoped, tag = 'output window, operand 0, single buffered']
    %8 = vsyncpa [#allocation4], 0
    %9 = vsyncpa [#allocation7], 0
    %10 = vsyncpa [#allocation5], 0
    // Predicated region
    $region2: #{tpu_custom_call.1} parent=1 // pred_check
      _
    $region3: #{tpu_custom_call.1} parent=1 // pred_check_branch
      %12 = sbr.rel (0) target = $region5
    $region4: #{tpu_custom_call.1} parent=1 // pred_region
      %s14 = ssub.s32 512, 512
      %15 = vsyncadd [#allocation4], %s14
      %s16 = sshll.u32 [#allocation3], 4
      %s17 = int_to_ptr.vmem [resolvable:$true] %s16
      %22 = dma.hbm_to_vmem [thread:$0]  %s0, 512, %s17, [#allocation4], 128, 128, 8
    $region5: #{tpu_custom_call.1} parent=1 // pred_fallthru
      _
    // Predicated region
    $region6: #{tpu_custom_call.1} parent=1 // pred_check
      _
    $region7: #{tpu_custom_call.1} parent=1 // pred_check_branch
      %24 = sbr.rel (0) target = $region9
    $region8: #{tpu_custom_call.1} parent=1 // pred_region
      %s26 = ssub.s32 3072, 3072
      %27 = vsyncadd [#allocation7], %s26
      %s28 = sshll.u32 [#allocation6], 4
      %s29 = int_to_ptr.vmem [resolvable:$true] %s28
      %34 = dma.hbm_to_vmem [thread:$0]  %s1, 3072, %s29, [#allocation7], 128, 128, 8
    $region9: #{tpu_custom_call.1} parent=1 // pred_fallthru
      _
    // Predicated region
    $region10: #{tpu_custom_call.1} parent=1 // pred_check
      _
    $region11: #{tpu_custom_call.1} parent=1 // pred_check_branch
      %36 = sbr.rel (0) target = $region13
    $region12: #{tpu_custom_call.1} parent=1 // pred_region
      _
    $region13: #{tpu_custom_call.1} parent=1 // pred_fallthru
      _
    // Predicated region
    $region14: #{tpu_custom_call.1} parent=1 // pred_check
      _
    $region15: #{tpu_custom_call.1} parent=1 // pred_check_branch
      %38 = sbr.rel (0) target = $region17
    $region16: #{tpu_custom_call.1} parent=1 // pred_region
      %39 = dma.done [#allocation4], 512
    $region17: #{tpu_custom_call.1} parent=1 // pred_fallthru
      _
    // Predicated region
    $region18: #{tpu_custom_call.1} parent=1 // pred_check
      _
    $region19: #{tpu_custom_call.1} parent=1 // pred_check_branch
      %41 = sbr.rel (0) target = $region21
    $region20: #{tpu_custom_call.1} parent=1 // pred_region
      %42 = dma.done [#allocation7], 3072
    $region21: #{tpu_custom_call.1} parent=1 // pred_fallthru
      _
    %v43 = vld [vmem:[#allocation3] sm:$0xff]
    %v44 = vld [vmem:[#allocation3 + $0x8] sm:$0x7f]
    %vm47 = vcmask 1040384
    %v48 = vrot.slane %v43, 7
    %v49 = vrot.slane %v44, 7
    %v50 = vsel %vm47, %v48, %v49
    %vm53 = vcmask 523265
    %54 = vst.msk [vmem:[#allocation2] sm:$0xfe] %vm53, %v48
    %vm55 = vcmask 523264
    %56 = vst.msk [vmem:[#allocation2 + $0x10] sm:$0xff] %vm55, %v50
    %vm57 = vcmask 516096
    %58 = vst.msk [vmem:[#allocation2] sm:$0x1] %vm57, 0.0
    %v59 = vld [vmem:[#allocation3] sm:$0xff]
    %v60 = vld [vmem:[#allocation3 + $0x8] sm:$0xff]
    %63 = vrot.lane.b32.xlu0 %v59, 64
    %v64 = vpop.permute.xlu0 %63
    %65 = vrot.lane.b32.xlu0 %v60, 64
    %v66 = vpop.permute.xlu0 %65
    %vm69 = vcmask 1048064
    %70 = vst.msk [vmem:[#allocation2] sm:$0xff] %vm69, %v64
    %71 = vst.msk [vmem:[#allocation2 + $0x10] sm:$0xff] %vm69, %v66
    %v72 = vld [vmem:[#allocation3 + $0x1] sm:$0xff]
    %v73 = vld [vmem:[#allocation3 + $0x9] sm:$0x7f]
    %74 = vst.msk [vmem:[#allocation2 + $0x8] sm:$0xff] %vm55, %v72
    %vm75 = vcmask 522240
    %76 = vst.msk [vmem:[#allocation2 + $0x18] sm:$0x7f] %vm75, %v73
    %77 = vst.msk [vmem:[#allocation2 + $0x1f] sm:$0x1] %vm57, 0.0
    %v78 = vld [vmem:[#allocation3 + $0x10] sm:$0xff]
    %v79 = vld [vmem:[#allocation3 + $0x18] sm:$0x7f]
    %v82 = vrot.slane %v78, 7
    %v83 = vrot.slane %v79, 7
    %v84 = vsel %vm47, %v82, %v83
    %87 = vst.msk [vmem:[#allocation2 + $0x20] sm:$0xfe] %vm53, %v82
    %88 = vst.msk [vmem:[#allocation2 + $0x30] sm:$0xff] %vm55, %v84
    %89 = vst.msk [vmem:[#allocation2 + $0x20] sm:$0x1] %vm57, 0.0
    %v90 = vld [vmem:[#allocation3 + $0x10] sm:$0xff]
    %v91 = vld [vmem:[#allocation3 + $0x18] sm:$0xff]
    %94 = vrot.lane.b32.xlu0 %v90, 64
    %v95 = vpop.permute.xlu0 %94
    %96 = vrot.lane.b32.xlu0 %v91, 64
    %v97 = vpop.permute.xlu0 %96
    %100 = vst.msk [vmem:[#allocation2 + $0x20] sm:$0xff] %vm69, %v95
    %101 = vst.msk [vmem:[#allocation2 + $0x30] sm:$0xff] %vm69, %v97
    %v102 = vld [vmem:[#allocation3 + $0x11] sm:$0xff]
    %v103 = vld [vmem:[#allocation3 + $0x19] sm:$0x7f]
    %104 = vst.msk [vmem:[#allocation2 + $0x28] sm:$0xff] %vm55, %v102
    %105 = vst.msk [vmem:[#allocation2 + $0x38] sm:$0x7f] %vm75, %v103
    %106 = vst.msk [vmem:[#allocation2 + $0x3f] sm:$0x1] %vm57, 0.0
    %v107 = vld [vmem:[#allocation2] sm:$0xff]
    %v108 = vld [vmem:[#allocation2 + $0x8] sm:$0xff]
    %v109 = vld [vmem:[#allocation2 + $0x10] sm:$0xff]
    %v110 = vld [vmem:[#allocation2 + $0x18] sm:$0xff]
    %v111 = vld [vmem:[#allocation2 + $0x20] sm:$0xff]
    %v112 = vld [vmem:[#allocation2 + $0x28] sm:$0xff]
    %v113 = vld [vmem:[#allocation2 + $0x30] sm:$0xff]
    %v114 = vld [vmem:[#allocation2 + $0x38] sm:$0xff]
    %v115 = vld [vmem:[#allocation6] sm:$0xff]
    %v116 = vld [vmem:[#allocation6 + $0x8] sm:$0xff]
    %v117 = vld [vmem:[#allocation6 + $0x10] sm:$0xff]
    %v118 = vld [vmem:[#allocation6 + $0x18] sm:$0xff]
    %v119 = vld [vmem:[#allocation6 + $0x20] sm:$0xff]
    %v120 = vld [vmem:[#allocation6 + $0x28] sm:$0xff]
    %v121 = vld [vmem:[#allocation6 + $0x30] sm:$0xff]
    %v122 = vld [vmem:[#allocation6 + $0x38] sm:$0xff]
    %v123 = vld [vmem:[#allocation6 + $0x40] sm:$0xff]
    %v124 = vld [vmem:[#allocation6 + $0x48] sm:$0xff]
    %v125 = vld [vmem:[#allocation6 + $0x50] sm:$0xff]
    %v126 = vld [vmem:[#allocation6 + $0x58] sm:$0xff]
    %v127 = vld [vmem:[#allocation6 + $0x60] sm:$0xff]
    %v128 = vld [vmem:[#allocation6 + $0x68] sm:$0xff]
    %v129 = vld [vmem:[#allocation6 + $0x70] sm:$0xff]
    %v130 = vld [vmem:[#allocation6 + $0x78] sm:$0xff]
    %v131 = vld [vmem:[#allocation6 + $0x80] sm:$0xff]
    %v132 = vld [vmem:[#allocation6 + $0x88] sm:$0xff]
    %v133 = vld [vmem:[#allocation6 + $0x90] sm:$0xff]
    %v134 = vld [vmem:[#allocation6 + $0x98] sm:$0xff]
    %v135 = vld [vmem:[#allocation6 + $0xa0] sm:$0xff]
    %v136 = vld [vmem:[#allocation6 + $0xa8] sm:$0xff]
    %v137 = vld [vmem:[#allocation6 + $0xb0] sm:$0xff]
    %v138 = vld [vmem:[#allocation6 + $0xb8] sm:$0xff]
    %v139 = vld [vmem:[%s2] sm:$0x1]
    %v141 = vlaneseq
    %v142 = vshrl.u32 %v141, 7
    %v143 = vsub.s32 0, %v142
    %v144 = vrot.slane %v139, %v143
    %v147 = vsel %vm55, %v108, 0
    %v150 = vsel %vm55, %v110, 0
    %v153 = vsel %vm55, %v112, 0
    %v156 = vsel %vm55, %v114, 0
    %158 = vmatprep.subr.mxu0 0.0
    %159 = vmatpush1.msra.mxu0 %v130
    %160 = vmatprep.subr.mxu0 0.0
    %161 = vmatpush1.msra.mxu0 %v129
    %162 = vmatprep.subr.mxu0 0.0
    %163 = vmatpush1.msra.mxu0 %v128
    %164 = vmatprep.subr.mxu0 0.0
    %165 = vmatpush1.msra.mxu0 %v127
    %166 = vmatprep.subr.mxu0 0.0
    %167 = vmatpush1.msra.mxu0 %v126
    %168 = vmatprep.subr.mxu0 0.0
    %169 = vmatpush1.msra.mxu0 %v125
    %170 = vmatprep.subr.mxu0 0.0
    %171 = vmatpush1.msra.mxu0 %v124
    %172 = vmatprep.subr.mxu0 0.0
    %173 = vmatpush1.msra.mxu0 %v123
    %174 = vmatprep.subr.mxu0 0.0
    %175 = vmatpush1.msra.mxu0 %v122
    %176 = vmatprep.subr.mxu0 0.0
    %177 = vmatpush1.msra.mxu0 %v121
    %178 = vmatprep.subr.mxu0 0.0
    %179 = vmatpush1.msra.mxu0 %v120
    %180 = vmatprep.subr.mxu0 0.0
    %181 = vmatpush1.msra.mxu0 %v119
    %182 = vmatprep.subr.mxu0 0.0
    %183 = vmatpush1.msra.mxu0 %v118
    %184 = vmatprep.subr.mxu0 0.0
    %185 = vmatpush1.msra.mxu0 %v117
    %186 = vmatprep.subr.mxu0 0.0
    %187 = vmatpush1.msra.mxu0 %v116
    %188 = vmatprep.subr.mxu0 0.0
    %189 = vmatpush1.msra.mxu0 %v115
    %190 = vmatprep.subr.mxu0 0.0
    %191 = vmatpush2.msra.mxu0 0.0
    %192 = vmatprep.subr.mxu0 0.0
    %193 = vmatpush2.msra.mxu0 0.0
    %194 = vmatprep.subr.mxu0 0.0
    %195 = vmatpush2.msra.mxu0 0.0
    %196 = vmatprep.subr.mxu0 0.0
    %197 = vmatpush2.msra.mxu0 0.0
    %198 = vmatprep.subr.mxu0 0.0
    %199 = vmatpush2.msra.mxu0 0.0
    %200 = vmatprep.subr.mxu0 0.0
    %201 = vmatpush2.msra.mxu0 0.0
    %202 = vmatprep.subr.mxu0 0.0
    %203 = vmatpush2.msra.mxu0 0.0
    %204 = vmatprep.subr.mxu0 0.0
    %205 = vmatpush2.msra.mxu0 0.0
    %206 = vmatprep.subr.mxu0 0.0
    %207 = vmatpush2.msra.mxu0 %v138
    %208 = vmatprep.subr.mxu0 0.0
    %209 = vmatpush2.msra.mxu0 %v137
    %210 = vmatprep.subr.mxu0 0.0
    %211 = vmatpush2.msra.mxu0 %v136
    %212 = vmatprep.subr.mxu0 0.0
    %213 = vmatpush2.msra.mxu0 %v135
    %214 = vmatprep.subr.mxu0 0.0
    %215 = vmatpush2.msra.mxu0 %v134
    %216 = vmatprep.subr.mxu0 0.0
    %217 = vmatpush2.msra.mxu0 %v133
    %218 = vmatprep.subr.mxu0 0.0
    %219 = vmatpush2.msra.mxu0 %v132
    %220 = vmatprep.subr.mxu0 0.0
    %221 = vmatpush2.msra.mxu0 %v131
    %222 = vmatprep.mubr.f32.mxu0 %v147
    %223 = vmatmul.mubr.f32.gmra.mxu0 %v107
    %v224 = vpop.f32.mrf.mxu0
    %v225 = vadd.f32 %v144, %v224
    %v226 = vpop.f32.mrf.mxu0
    %227 = vmatprep.mubr.f32.mxu0 %v150
    %228 = vmatmul.mubr.f32.gmra.mxu0 %v109
    %v229 = vpop.f32.mrf.mxu0
    %v230 = vadd.f32 %v144, %v229
    %v231 = vpop.f32.mrf.mxu0
    %232 = vmatprep.mubr.f32.mxu0 %v153
    %233 = vmatmul.mubr.f32.gmra.mxu0 %v111
    %v234 = vpop.f32.mrf.mxu0
    %v235 = vadd.f32 %v144, %v234
    %v236 = vpop.f32.mrf.mxu0
    %237 = vmatprep.mubr.f32.mxu0 %v156
    %238 = vmatmul.mubr.f32.gmra.mxu0 %v113
    %v239 = vpop.f32.mrf.mxu0
    %v240 = vadd.f32 %v144, %v239
    %v241 = vpop.f32.mrf.mxu0
    %242 = vdwg.mxu0
    %v243 = vmin.f32 %v225, 0.0
    %v244 = vmin.f32 %v230, 0.0
    %v245 = vmin.f32 %v235, 0.0
    %v246 = vmin.f32 %v240, 0.0
    %v247 = vmul.f32 %v243, 1.442695
    %v248 = vpow.pop %v247
    %v249 = vmul.f32 %v244, 1.442695
    %v250 = vpow.pop %v249
    %v251 = vmul.f32 %v245, 1.442695
    %v252 = vpow.pop %v251
    %v253 = vmul.f32 %v246, 1.442695
    %v254 = vpow.pop %v253
    %v255 = vsub.f32 %v248, 1.0
    %v256 = vsub.f32 %v250, 1.0
    %v257 = vsub.f32 %v252, 1.0
    %v258 = vsub.f32 %v254, 1.0
    %v259 = vmul.f32 %v255, 1.6732632
    %v260 = vmul.f32 %v256, 1.6732632
    %v261 = vmul.f32 %v257, 1.6732632
    %v262 = vmul.f32 %v258, 1.6732632
    %vm263 = vcmp.gt.f32.partialorder %v225, 0.0
    %vm264 = vcmp.gt.f32.partialorder %v230, 0.0
    %vm265 = vcmp.gt.f32.partialorder %v235, 0.0
    %vm266 = vcmp.gt.f32.partialorder %v240, 0.0
    %v267 = vsel %vm263, %v225, %v259
    %v268 = vsel %vm264, %v230, %v260
    %v269 = vsel %vm265, %v235, %v261
    %v270 = vsel %vm266, %v240, %v262
    %v271 = vmul.f32 %v267, 1.050701
    %v272 = vmul.f32 %v268, 1.050701
    %v273 = vmul.f32 %v269, 1.050701
    %v274 = vmul.f32 %v270, 1.050701
    %275 = vst [vmem:[#allocation8] sm:$0xff] %v271
    %276 = vst [vmem:[#allocation8 + $0x8] sm:$0xff] %v272
    %277 = vst [vmem:[#allocation8 + $0x10] sm:$0xff] %v273
    %278 = vst [vmem:[#allocation8 + $0x18] sm:$0xff] %v274
    // Predicated region
    $region22: #{tpu_custom_call.1} parent=1 // pred_check
      _
    $region23: #{tpu_custom_call.1} parent=1 // pred_check_branch
      %280 = sbr.rel (0) target = $region25
    $region24: #{tpu_custom_call.1} parent=1 // pred_region
      %s282 = ssub.s32 512, 512
      %283 = vsyncadd [#allocation5], %s282
      %s284 = sshll.u32 [#allocation8], 4
      %s285 = int_to_ptr.vmem [resolvable:$true] %s284
      %290 = dma.vmem_to_hbm [thread:$0]  %s285, 512, %s3, [#allocation5], 128, 128, 8
    $region25: #{tpu_custom_call.1} parent=1 // pred_fallthru
      _
    // Predicated region
    $region26: #{tpu_custom_call.1} parent=1 // pred_check
      _
    $region27: #{tpu_custom_call.1} parent=1 // pred_check_branch
      %292 = sbr.rel (0) target = $region29
    $region28: #{tpu_custom_call.1} parent=1 // pred_region
      %293 = dma.done [#allocation5], 512
    $region29: #{tpu_custom_call.1} parent=1 // pred_fallthru
      _
    %294 = vsyncpa [#allocation4], 1
    %295 = vsyncpa [#allocation7], 1
    %296 = vsyncpa [#allocation5], 1

</llo_original>
